<compile_context>
chip_gen: v7x
topology: tpu7x:2x2x1
jax: 0.10.0
libtpu: 0.0.40
codegen_flags: <defaults>
</compile_context>

<pallas_src>
import math
from functools import partial

import jax
import jax.numpy as jnp
from jax.experimental import pallas as pl
from jax.experimental.pallas import tpu as pltpu

BN_EPS = 1e-5
_VMEM_LIMIT_BYTES = 48 * 1024 * 1024  # safe on v7x (64 MiB/TC), below v5e/v6e 128 MiB


def _round_up(x, m):
    return ((x + m - 1) // m) * m


def _conv1x1(w, x, use_mxu):
    """(Cout, Cin) @ (Cin, T) -> (Cout, T) in f32."""
    if use_mxu:
        return jnp.dot(w, x, preferred_element_type=jnp.float32)
    # VPU path for tiny Cin: broadcast FMAs with independent accumulators so
    # the 4 VALU slots can co-issue (no single serial dependence chain).
    cin = x.shape[0]
    n_acc = min(4, cin)
    accs = []
    for a in range(n_acc):
        acc = w[:, a:a + 1] * x[a:a + 1, :]
        for c in range(a + n_acc, cin, n_acc):
            acc = acc + w[:, c:c + 1] * x[c:c + 1, :]
        accs.append(acc)
    out = accs[0]
    for acc in accs[1:]:
        out = out + acc
    return out


def _stats_kernel(x_ref, w_ref, stat_ref, *, use_mxu):
    # x_ref: (1, Cin, tHW); w_ref: (Cout, Cin); stat_ref: (1, Cout, 2) stays
    # resident across the spatial-tile axis (accumulated in VMEM, one tiny
    # writeback DMA per image -> block lane-density is immaterial here).
    t = pl.program_id(1)

    @pl.when(t == 0)
    def _():
        stat_ref[...] = jnp.zeros_like(stat_ref)

    x = jnp.maximum(x_ref[0], 0.0).astype(jnp.float32)       # ReLU
    y = _conv1x1(w_ref[...], x, use_mxu)                      # (Cout, tHW) f32
    s = jnp.sum(y, axis=1, keepdims=True)                     # (Cout, 1)
    ss = jnp.sum(y * y, axis=1, keepdims=True)                # (Cout, 1)
    stat_ref[...] += jnp.concatenate([s, ss], axis=1)[None]   # (1, Cout, 2)


def _apply_kernel(x_ref, w_ref, shift_ref, o_ref, *, use_mxu):
    # x_ref: (1, Cin, tHW); w_ref: scale-folded weights (Cout, Cin);
    # shift_ref: (Cout, 1); o_ref: (1, Cout, tHW) (lane-dense output).
    x = jnp.maximum(x_ref[0], 0.0).astype(jnp.float32)
    y = _conv1x1(w_ref[...], x, use_mxu)
    o_ref[...] = (y + shift_ref[...]).astype(o_ref.dtype)[None]


def _choose_tile(hw, cin, cout, align, max_tile):
    """Largest `align`-aligned lane tile whose per-step working set
    (double-buffered x/out blocks + f32 intermediates) fits the VMEM budget."""
    budget = int(0.75 * _VMEM_LIMIT_BYTES)
    bytes_per_lane = 4 * (3 * cin + 3 * cout)
    t = budget // bytes_per_lane
    t = min(t, max_tile, _round_up(hw, align))
    return max(align, (t // align) * align)


def conv_block(x_nchw, weight, bias, gamma, beta, *, eps=BN_EPS,
               max_tile=4096, use_mxu=None):
    """Forward of ConvBlock (kernel_size=1), BatchNorm2d in training mode."""
    N, Cin, H, W = x_nchw.shape
    Cout = weight.shape[0]
    HW = H * W
    M = N * HW

    del bias  # conv bias is exactly cancelled by the BN mean subtraction

    if use_mxu is None:
        # TODO(synk): lower this threshold to ~4 on v7x (3.2 TB/s HBM shrinks
        #             the per-byte VALU budget); needs a per-generation switch.
        use_mxu = Cin >= 8

    x3 = x_nchw.reshape(N, Cin, HW)                       # free reshape
    w2 = weight.reshape(Cout, Cin).astype(jnp.float32)    # squeeze 1x1 kernel

    align = 256 if use_mxu else 128                       # 2x256^2 MXU on v6e/v7x
    t_hw = _choose_tile(HW, Cin, Cout, align, max_tile)
    n_t = pl.cdiv(HW, t_hw)
    HW_pad = n_t * t_hw
    if HW_pad > HW:
        # Zero padding is exact for the stats: relu(0)=0 and there is no bias,
        # so padded columns contribute 0 to both sum and sum-of-squares.
        x3 = jnp.pad(x3, ((0, 0), (0, 0), (0, HW_pad - HW)))

    grid = (N, n_t)
    x_spec = pl.BlockSpec((1, Cin, t_hw), lambda n, t: (n, 0, t))
    w_spec = pl.BlockSpec((Cout, Cin), lambda n, t: (0, 0))

    # Pass 1: per-image (Cout, 2) = [sum, sum-of-squares] of y = W @ relu(x),
    # accumulated across the spatial-tile axis in the resident output block.
    stats = pl.pallas_call(
        partial(_stats_kernel, use_mxu=use_mxu),
        out_shape=jax.ShapeDtypeStruct((N, Cout, 2), jnp.float32),
        grid_spec=pltpu.PrefetchScalarGridSpec(
            num_scalar_prefetch=0,
            grid=grid,
            in_specs=[x_spec, w_spec],
            out_specs=pl.BlockSpec((1, Cout, 2), lambda n, t: (n, 0, 0)),
        ),
        compiler_params=pltpu.CompilerParams(
            dimension_semantics=("parallel", "arbitrary"),
            vmem_limit_bytes=_VMEM_LIMIT_BYTES,
        ),
    )(x3, w2)

    # Tiny (Cout,)-sized BN folding in plain JAX.
    # TODO(synk): E[y^2]-E[y]^2 can lose precision for very large M; switch to
    #             a shifted / Welford-style combine if tolerances require it.
    total = jnp.sum(stats[:, :, 0], axis=0)
    total_sq = jnp.sum(stats[:, :, 1], axis=0)
    mean = total / M
    var = jnp.maximum(total_sq / M - mean * mean, 0.0)    # biased var (training BN)
    inv = jax.lax.rsqrt(var + eps)
    scale = gamma.astype(jnp.float32) * inv               # (Cout,)
    shift = (beta.astype(jnp.float32) - mean * scale).reshape(Cout, 1)
    w_fold = w2 * scale[:, None]                          # BN scale folded into W

    # Pass 2: recompute the cheap conv with scale-folded weights, add shift.
    out3 = pl.pallas_call(
        partial(_apply_kernel, use_mxu=use_mxu),
        out_shape=jax.ShapeDtypeStruct((N, Cout, HW_pad), x_nchw.dtype),
        grid_spec=pltpu.PrefetchScalarGridSpec(
            num_scalar_prefetch=0,
            grid=grid,
            in_specs=[x_spec, w_spec,
                      pl.BlockSpec((Cout, 1), lambda n, t: (0, 0))],
            out_specs=pl.BlockSpec((1, Cout, t_hw), lambda n, t: (n, 0, t)),
        ),
        compiler_params=pltpu.CompilerParams(
            dimension_semantics=("parallel", "parallel"),
            vmem_limit_bytes=_VMEM_LIMIT_BYTES,
        ),
    )(x3, w_fold, shift)

    return out3[:, :, :HW].reshape(N, Cout, H, W)


def _reference(x, weight, bias, gamma, beta, eps=BN_EPS):
    """Pure-JAX reference of the PyTorch ConvBlock (training-mode BN)."""
    Cout, Cin = weight.shape[0], weight.shape[1]
    xr = jnp.maximum(x, 0.0)
    w2 = weight.reshape(Cout, Cin)
    y = jnp.einsum("nchw,oc->nohw", xr, w2) + bias[None, :, None, None]
    mu = y.mean(axis=(0, 2, 3), keepdims=True)
    var = ((y - mu) ** 2).mean(axis=(0, 2, 3), keepdims=True)
    return (y - mu) / jnp.sqrt(var + eps) * gamma[None, :, None, None] \
        + beta[None, :, None, None]


if __name__ == "__main__":
    key = jax.random.PRNGKey(0)

    def make_inputs(k, N, Cin, Cout, H, W):
        kx, kw, kb, kg, kbe = jax.random.split(k, 5)
        bound = 1.0 / math.sqrt(Cin)
        x = jax.random.normal(kx, (N, Cin, H, W), jnp.float32)
        weight = jax.random.uniform(kw, (Cout, Cin, 1, 1), jnp.float32, -bound, bound)
        bias = jax.random.uniform(kb, (Cout,), jnp.float32, -bound, bound)
        gamma = 1.0 + 0.1 * jax.random.normal(kg, (Cout,), jnp.float32)
        beta = 0.1 * jax.random.normal(kbe, (Cout,), jnp.float32)
        return x, weight, bias, gamma, beta

    k1, k2 = jax.random.split(key)

    # Case 1: tiny channels -> VPU broadcast-FMA path; max_tile=128 forces a
    # real multi-tile grid (HW=256 -> 2 spatial tiles), exercising the
    # cross-tile stats accumulation.
    x, w, b, g, be = make_inputs(k1, 2, 4, 8, 16, 16)
    out = conv_block(x, w, b, g, be, max_tile=128)
    jax.block_until_ready(out)
    ref = _reference(x, w, b, g, be)
    assert out.shape == ref.shape
    err1 = float(jnp.max(jnp.abs(out - ref)))
    assert err1 < 1e-4, f"VPU-path max abs error {err1}"

    # Case 2: larger channels + non-128-friendly spatial size -> MXU path with
    # a cdiv grid and zero padding of the spatial tail.
    x, w, b, g, be = make_inputs(k2, 2, 16, 32, 15, 15)
    out = conv_block(x, w, b, g, be)
    jax.block_until_ready(out)
    ref = _reference(x, w, b, g, be)
    err2 = float(jnp.max(jnp.abs(out - ref)))
    assert err2 < 1e-4, f"MXU-path max abs error {err2}"

    print("KERNEL_OK")
</pallas_src>

<mosaic_0001>
module attributes {stable_mosaic.version = 11 : i64} {
  func.func @_stats_kernel(%arg0: i32, %arg1: i32, %arg2: memref<1x4x128xf32, #tpu.memory_space<vmem>>, %arg3: memref<8x4xf32, #tpu.memory_space<vmem>>, %arg4: memref<1x8x2xf32, #tpu.memory_space<vmem>>) attributes {dimension_semantics = [#tpu.dimension_semantics<parallel>, #tpu.dimension_semantics<arbitrary>], iteration_bounds = array<i64: 2, 2>, scalar_prefetch = 0 : i64, scratch_operands = 0 : i64, tpu.core_type = #tpu.core_type<tc>, window_params = [{transform_indices = @transform_0, window_bounds = array<i64: 1, 4, 128>}, {pipeline_mode = #tpu.pipeline_mode<synchronous>, transform_indices = @transform_1, window_bounds = array<i64: 8, 4>}, {transform_indices = @transform_2, window_bounds = array<i64: 1, 8, 2>}]} {
    %c0_i32 = arith.constant 0 : i32
    %0 = arith.cmpi eq, %arg1, %c0_i32 : i32
    %1 = arith.extui %0 : i1 to i32
    %c0_i32_0 = arith.constant 0 : i32
    %2 = arith.cmpi ne, %1, %c0_i32_0 : i32
    scf.if %2 {
      %cst_13 = arith.constant 0.000000e+00 : f32
      %41 = vector.broadcast %cst_13 : f32 to vector<1x8x2xf32>
      %c0_14 = arith.constant 0 : index
      %c0_15 = arith.constant 0 : index
      %c0_16 = arith.constant 0 : index
      %42 = vector.load %arg4[%c0_14, %c0_15, %c0_16] : memref<1x8x2xf32, #tpu.memory_space<vmem>>, vector<1x8x2xf32>
      tpu.vector_store %arg4[%c0_14, %c0_15, %c0_16], %41 {strides = array<i32>} : memref<1x8x2xf32, #tpu.memory_space<vmem>>, vector<1x8x2xf32>,
    } else {
    }
    %c0 = arith.constant 0 : index
    %c0_1 = arith.constant 0 : index
    %c0_2 = arith.constant 0 : index
    %3 = vector.load %arg2[%c0, %c0_1, %c0_2] : memref<1x4x128xf32, #tpu.memory_space<vmem>>, vector<1x4x128xf32>
    %4 = vector.shape_cast %3 : vector<1x4x128xf32> to vector<4x128xf32>
    %cst = arith.constant 0.000000e+00 : f32
    %5 = vector.broadcast %cst : f32 to vector<4x128xf32>
    %6 = arith.maximumf %4, %5 : vector<4x128xf32>
    %c0_3 = arith.constant 0 : index
    %c0_4 = arith.constant 0 : index
    %7 = vector.load %arg3[%c0_3, %c0_4] : memref<8x4xf32, #tpu.memory_space<vmem>>, vector<8x4xf32>
    %8 = vector.extract_strided_slice %7 {offsets = [0, 0], sizes = [8, 1], strides = [1, 1]} : vector<8x4xf32> to vector<8x1xf32>
    %9 = vector.extract_strided_slice %6 {offsets = [0, 0], sizes = [1, 128], strides = [1, 1]} : vector<4x128xf32> to vector<1x128xf32>
    %10 = vector.broadcast %8 : vector<8x1xf32> to vector<8x128xf32>
    %11 = vector.broadcast %9 : vector<1x128xf32> to vector<8x128xf32>
    %12 = arith.mulf %10, %11 : vector<8x128xf32>
    %13 = vector.extract_strided_slice %7 {offsets = [0, 1], sizes = [8, 1], strides = [1, 1]} : vector<8x4xf32> to vector<8x1xf32>
    %14 = vector.extract_strided_slice %6 {offsets = [1, 0], sizes = [1, 128], strides = [1, 1]} : vector<4x128xf32> to vector<1x128xf32>
    %15 = vector.broadcast %13 : vector<8x1xf32> to vector<8x128xf32>
    %16 = vector.broadcast %14 : vector<1x128xf32> to vector<8x128xf32>
    %17 = arith.mulf %15, %16 : vector<8x128xf32>
    %18 = vector.extract_strided_slice %7 {offsets = [0, 2], sizes = [8, 1], strides = [1, 1]} : vector<8x4xf32> to vector<8x1xf32>
    %19 = vector.extract_strided_slice %6 {offsets = [2, 0], sizes = [1, 128], strides = [1, 1]} : vector<4x128xf32> to vector<1x128xf32>
    %20 = vector.broadcast %18 : vector<8x1xf32> to vector<8x128xf32>
    %21 = vector.broadcast %19 : vector<1x128xf32> to vector<8x128xf32>
    %22 = arith.mulf %20, %21 : vector<8x128xf32>
    %23 = vector.extract_strided_slice %7 {offsets = [0, 3], sizes = [8, 1], strides = [1, 1]} : vector<8x4xf32> to vector<8x1xf32>
    %24 = vector.extract_strided_slice %6 {offsets = [3, 0], sizes = [1, 128], strides = [1, 1]} : vector<4x128xf32> to vector<1x128xf32>
    %25 = vector.broadcast %23 : vector<8x1xf32> to vector<8x128xf32>
    %26 = vector.broadcast %24 : vector<1x128xf32> to vector<8x128xf32>
    %27 = arith.mulf %25, %26 : vector<8x128xf32>
    %28 = arith.addf %12, %17 : vector<8x128xf32>
    %29 = arith.addf %28, %22 : vector<8x128xf32>
    %30 = arith.addf %29, %27 : vector<8x128xf32>
    %cst_5 = arith.constant dense<0.000000e+00> : vector<8xf32>
    %31 = vector.multi_reduction <add>, %30, %cst_5 [1] : vector<8x128xf32> to vector<8xf32>
    %32 = vector.shape_cast %31 : vector<8xf32> to vector<8x1xf32>
    %33 = arith.mulf %30, %30 : vector<8x128xf32>
    %cst_6 = arith.constant dense<0.000000e+00> : vector<8xf32>
    %34 = vector.multi_reduction <add>, %33, %cst_6 [1] : vector<8x128xf32> to vector<8xf32>
    %35 = vector.shape_cast %34 : vector<8xf32> to vector<8x1xf32>
    %c0_7 = arith.constant 0 : index
    %c0_8 = arith.constant 0 : index
    %c0_9 = arith.constant 0 : index
    %36 = vector.load %arg4[%c0_7, %c0_8, %c0_9] : memref<1x8x2xf32, #tpu.memory_space<vmem>>, vector<1x8x2xf32>
    %37 = tpu.concatenate %32, %35 in 1 : vector<8x1xf32>, vector<8x1xf32> -> vector<8x2xf32>
    %38 = vector.shape_cast %37 : vector<8x2xf32> to vector<1x8x2xf32>
    %39 = arith.addf %36, %38 : vector<1x8x2xf32>
    %c0_10 = arith.constant 0 : index
    %c0_11 = arith.constant 0 : index
    %c0_12 = arith.constant 0 : index
    %40 = vector.load %arg4[%c0_10, %c0_11, %c0_12] : memref<1x8x2xf32, #tpu.memory_space<vmem>>, vector<1x8x2xf32>
    tpu.vector_store %arg4[%c0_10, %c0_11, %c0_12], %39 {strides = array<i32>} : memref<1x8x2xf32, #tpu.memory_space<vmem>>, vector<1x8x2xf32>,
    return
  }
  func.func @transform_0(%arg0: i32, %arg1: i32) -> (i32, i32, i32) {
    %c0_i32 = arith.constant 0 : i32
    %c0_i32_0 = arith.constant 0 : i32
    return %arg0, %c0_i32, %arg1 : i32, i32, i32
  }
  func.func @transform_1(%arg0: i32, %arg1: i32) -> (i32, i32) {
    %c0_i32 = arith.constant 0 : i32
    %c0_i32_0 = arith.constant 0 : i32
    %c0_i32_1 = arith.constant 0 : i32
    return %c0_i32, %c0_i32_0 : i32, i32
  }
  func.func @transform_2(%arg0: i32, %arg1: i32) -> (i32, i32, i32) {
    %c0_i32 = arith.constant 0 : i32
    %c0_i32_0 = arith.constant 0 : i32
    %c0_i32_1 = arith.constant 0 : i32
    return %arg0, %c0_i32, %c0_i32_0 : i32, i32, i32
  }
}

</mosaic_0001>

<llo_original>
// kernel: tpu_custom_call.1
$region0: #{tpu_custom_call.1}
  #allocation0 [shape = 'u32[]', space=smem, size = 0x4, offset = 0x4, fixed_abs, tag = 'smem constant byte address 0x4 - core index']
  #allocation1 [shape = 'u32[144,128]{1,0:T(1,128)}', space=vmem, size = 0x12000, scoped, tag = 'internal scratch']
  %s0 = inlined_call_operand.hbm [shape: f32[2,4,256], index: 0, kind: input, shape index: {}]
  %s1 = inlined_call_operand.vmem [shape: f32[8,4], index: 1, kind: input, shape index: {}]
  %s2 = inlined_call_operand.vmem [shape: f32[2,8,2], index: 2, kind: output, shape index: {}]
  %s3 = sld [smem:[#allocation0]]
  $region49: #{tpu_custom_call.1} parent=0
    _
  %s5 = ssub.s32 1, %s3
  %s6 = scalar_select 0, %s5, %s3
  $region1: #{tpu_custom_call.1} parent=0
    #allocation2 [shape = 'u8[4096]{0}', space=vmem, size = 0x1000, scoped, tag = 'input window, operand 0']
    #allocation3 [shape = 's32[2]{0}', space=sflag, size = 0x8, scoped, tag = 'scoped memory for tpu_custom_call.1']
    %7 = vsyncpa [#allocation3], 0
    %s8 = scalar_lea.sflag [#allocation3], 1
    %9 = vsyncpa %s8, 0
    loop: start=0, step=1, limit=6
    $region2: #{tpu_custom_call.1} parent=1 // loop_pre_header
      _
    $region3: #{tpu_custom_call.1} parent=1 // loop_header
      %s11 = sphi 0, %s15
      %p12 = scmp.ge.s32.totalorder %s11, 6
      %s18 = sphi 0, %s30
      %s19 = sphi 0, %s26
      %s20 = sphi 0, %s18
      %s21 = sphi 0, %s19
      %s22 = sphi 0, %s20
      %s23 = sphi 0, %s21
      %s35 = sphi 0, %s37
      %s38 = sphi 0, %s35
      %s39 = sphi 0, %s38
      %s55 = sphi 0, %s39
      %s59 = sphi 0, %s59
      %s61 = sphi 0, %s59
      %s62 = sphi 0, %s61
      %s76 = sphi 0, %s62
      %s82 = sphi 0, %s84
      %s85 = sphi 0, %s82
      %s86 = sphi 0, %s85
      %s102 = sphi 0, %s86
    $region4: #{tpu_custom_call.1} parent=1 // loop_header_branch
      %14 = sbr.rel (%p12) target = $region8
    $region5: #{tpu_custom_call.1} parent=1 // loop_body
      %s16 = ssub.s32 %s11, 1
      %s17 = ssub.s32 %s11, 2
      %s24 = sadd.s32 1, %s19
      %p25 = scmp.ge.s32.totalorder %s24, 2
      %s26 = scalar_select %p25, 0, %s24
      %s27 = sadd.s32 1, %s18
      %s28 = scalar_select %p25, %s27, %s18
      %p29 = scmp.ge.s32.totalorder %s28, 2
      %s30 = scalar_select %p29, 0, %s28
      %s31 = ssub.s32 %s18, %s30
      %s32 = ssub.s32 %s19, %s26
      %s33 = sor.u32 %s31, %s32
      %p34 = scmp.eq.s32.totalorder %s33, 0
      %s36 = sadd.s32 %s35, 1
      %s37 = scalar_select %p34, %s35, %s36
      %p40 = pneg %p34
      %p41 = scmp.eq.s32.totalorder %s11, 3
      %p42 = por %p40, %p41
      %p43 = scmp.ne.s32.totalorder %s35, %s38
      %p44 = scmp.eq.s32.totalorder %s11, 0
      %p45 = por %p43, %p44
      %p46 = scmp.ne.s32.totalorder %s35, %s38
      %p47 = scmp.eq.s32.totalorder %s16, 3
      %p48 = por %p46, %p47
      %p49 = scmp.ne.s32.totalorder %s38, %s39
      %p50 = scmp.eq.s32.totalorder %s16, 0
      %p51 = por %p49, %p50
      %p52 = scmp.ne.s32.totalorder %s38, %s39
      %p53 = scmp.eq.s32.totalorder %s17, 3
      %p54 = por %p52, %p53
      %p56 = scmp.ne.s32.totalorder %s39, %s55
      %p57 = scmp.eq.s32.totalorder %s17, 0
      %p58 = por %p56, %p57
      %s60 = sadd.s32 %s59, 1
      %p63 = scmp.eq.s32.totalorder %s11, 3
      %p64 = scmp.ne.s32.totalorder %s59, %s61
      %p65 = scmp.eq.s32.totalorder %s11, 0
      %p66 = por %p64, %p65
      %p67 = scmp.ne.s32.totalorder %s59, %s61
      %p68 = scmp.eq.s32.totalorder %s16, 3
      %p69 = por %p67, %p68
      %p70 = scmp.ne.s32.totalorder %s61, %s62
      %p71 = scmp.eq.s32.totalorder %s16, 0
      %p72 = por %p70, %p71
      %p73 = scmp.ne.s32.totalorder %s61, %s62
      %p74 = scmp.eq.s32.totalorder %s17, 3
      %p75 = por %p73, %p74
      %p77 = scmp.ne.s32.totalorder %s62, %s76
      %p78 = scmp.eq.s32.totalorder %s17, 0
      %p79 = por %p77, %p78
      %s80 = ssub.s32 %s18, %s30
      %p81 = scmp.eq.s32.totalorder %s80, 0
      %s83 = sadd.s32 %s82, 1
      %s84 = scalar_select %p81, %s82, %s83
      %p87 = pneg %p81
      %p88 = scmp.eq.s32.totalorder %s11, 3
      %p89 = por %p87, %p88
      %p90 = scmp.ne.s32.totalorder %s82, %s85
      %p91 = scmp.eq.s32.totalorder %s11, 0
      %p92 = por %p90, %p91
      %p93 = scmp.ne.s32.totalorder %s82, %s85
      %p94 = scmp.eq.s32.totalorder %s16, 3
      %p95 = por %p93, %p94
      %p96 = scmp.ne.s32.totalorder %s85, %s86
      %p97 = scmp.eq.s32.totalorder %s16, 0
      %p98 = por %p96, %p97
      %p99 = scmp.ne.s32.totalorder %s85, %s86
      %p100 = scmp.eq.s32.totalorder %s17, 3
      %p101 = por %p99, %p100
      %p103 = scmp.ne.s32.totalorder %s86, %s102
      %p104 = scmp.eq.s32.totalorder %s17, 0
      %p105 = por %p103, %p104
      %p106 = scmp.le.s32.totalorder 1, %s11
      %p107 = scmp.lt.s32.totalorder %s11, 5
      %p108 = pnand %p106, %p107
      %p109 = pneg %p108
      // Predicated region
      $region9: #{tpu_custom_call.1} parent=5 // pred_check
        _
      $region10: #{tpu_custom_call.1} parent=5 // pred_check_branch
        %111 = sbr.rel (%p108) target = $region12
      $region11: #{tpu_custom_call.1} parent=5 // pred_region
        %s112 = ssub.s32 %s11, 1
        // Predicated region
        $region13: #{tpu_custom_call.1} parent=11 // pred_check
          %p113 = pneg %p72
        $region14: #{tpu_custom_call.1} parent=11 // pred_check_branch
          %115 = sbr.rel (%p113) target = $region16
        $region15: #{tpu_custom_call.1} parent=11 // pred_region
          _
        $region16: #{tpu_custom_call.1} parent=11 // pred_fallthru
          _
      $region12: #{tpu_custom_call.1} parent=5 // pred_fallthru
        _
      %p116 = scmp.lt.s32.totalorder %s11, 4
      // Predicated region
      $region17: #{tpu_custom_call.1} parent=5 // pred_check
        %p117 = pneg %p116
      $region18: #{tpu_custom_call.1} parent=5 // pred_check_branch
        %119 = sbr.rel (%p117) target = $region20
      $region19: #{tpu_custom_call.1} parent=5 // pred_region
        // Predicated region
        $region21: #{tpu_custom_call.1} parent=19 // pred_check
          %p120 = pneg %p45
        $region22: #{tpu_custom_call.1} parent=19 // pred_check_branch
          %122 = sbr.rel (%p120) target = $region24
        $region23: #{tpu_custom_call.1} parent=19 // pred_region
          %s123 = sand.u32 %s35, 1
          %s124 = scalar_lea.sflag [#allocation3], %s123
          %s125 = sand.u32 %s35, 1
          %s126 = smul.addr %s125, 4
          %s127 = scalar_lea.vmem [#allocation2], %s126
          %s129 = ssub.s32 64, 64
          %130 = vsyncadd %s124, %s129
          %s131 = smul.addr %s18, 2
          %s132 = sadd.s32 %s19, %s131
          %s133 = smul.addr %s132, 64
          %s134 = scalar_lea.hbm %s0, %s133
          %s136 = sshll.u32 %s127, 4
          %s137 = int_to_ptr.vmem [resolvable:$true] %s136
          %139 = dma.hbm_to_vmem [thread:$0]  %s134, 64, %s137, %s124
        $region24: #{tpu_custom_call.1} parent=19 // pred_fallthru
          _
      $region20: #{tpu_custom_call.1} parent=5 // pred_fallthru
        _
      %p140 = scmp.le.s32.totalorder 1, %s11
      %p141 = scmp.lt.s32.totalorder %s11, 5
      %p142 = pnand %p140, %p141
      %p143 = pneg %p142
      // Predicated region
      $region25: #{tpu_custom_call.1} parent=5 // pred_check
        _
      $region26: #{tpu_custom_call.1} parent=5 // pred_check_branch
        %145 = sbr.rel (%p142) target = $region28
      $region27: #{tpu_custom_call.1} parent=5 // pred_region
        %s146 = ssub.s32 %s11, 1
        %s147 = sand.u32 %s38, 1
        %s148 = scalar_lea.sflag [#allocation3], %s147
        %s149 = sand.u32 %s38, 1
        %s150 = smul.addr %s149, 4
        %s151 = scalar_lea.vmem [#allocation2], %s150
        // Predicated region
        $region29: #{tpu_custom_call.1} parent=27 // pred_check
          %p152 = pneg %p51
        $region30: #{tpu_custom_call.1} parent=27 // pred_check_branch
          %154 = sbr.rel (%p152) target = $region32
        $region31: #{tpu_custom_call.1} parent=27 // pred_region
          %155 = dma.done %s148, 64
        $region32: #{tpu_custom_call.1} parent=27 // pred_fallthru
          _
        %s156 = sand.u32 %s38, 1
        %s157 = scalar_lea.sflag [#allocation3], %s156
        %s158 = sand.u32 %s38, 1
        %s159 = smul.addr %s158, 4
        %s160 = scalar_lea.vmem [#allocation2], %s159
        %p161 = pneg %p51
        %p162 = pneg %p48
        %p163 = pneg %p72
        %p164 = pneg %p69
        %p165 = pneg %p98
        %p166 = pneg %p95
        %p167 = scmp.lt.s32.totalorder %s20, 1
        %s168 = scalar_select %p167, %s20, 1
        %s169 = smul.addr %s168, 8
        %s170 = scalar_lea.vmem %s2, %s169
        %p171 = scmp.lt.s32.totalorder %s20, 1
        %s172 = scalar_select %p171, %s20, 1
        %s173 = smul.addr %s172, 8
        %s174 = scalar_lea.vmem %s2, %s173
        %p175 = scmp.eq.s32.totalorder %s21, 0
        // Predicated region
        $region33: #{tpu_custom_call.1} parent=27 // pred_check
          %p176 = pneg %p175
        $region34: #{tpu_custom_call.1} parent=27 // pred_check_branch
          %178 = sbr.rel (%p176) target = $region36
        $region35: #{tpu_custom_call.1} parent=27 // pred_region
          %vm179 = vcmask 15360
          %180 = vst.msk [vmem:[%s174] sm:$0xff] %vm179, 0.0
        $region36: #{tpu_custom_call.1} parent=27 // pred_fallthru
          _
        %v181 = vld [vmem:[%s151] sm:$0xf]
        %v182 = vmax.f32 %v181, 0.0
        %v183 = vld [vmem:[%s1] sm:$0xff]
        %185 = vset.pattern.permute.xlu0 0
        %186 = vperm.xlu0 %185, %v183
        %v187 = vpop.permute.xlu0 %186
        %v189 = vlaneseq
        %v190 = vshrl.u32 %v189, 7
        %v191 = vsub.s32 0, %v190
        %v192 = vrot.slane %v182, %v191
        %v193 = vmul.f32 %v187, %v192
        %194 = vset.pattern.permute.xlu0 1
        %195 = vperm.xlu0 %194, %v183
        %v196 = vpop.permute.xlu0 %195
        %v198 = vlaneseq
        %v199 = vshrl.u32 %v198, 7
        %v200 = vsub.s32 1, %v199
        %v201 = vrot.slane %v182, %v200
        %v202 = vmul.f32 %v196, %v201
        %203 = vset.pattern.permute.xlu0 2
        %204 = vperm.xlu0 %203, %v183
        %v205 = vpop.permute.xlu0 %204
        %v207 = vlaneseq
        %v208 = vshrl.u32 %v207, 7
        %v209 = vsub.s32 2, %v208
        %v210 = vrot.slane %v182, %v209
        %v211 = vmul.f32 %v205, %v210
        %212 = vset.pattern.permute.xlu0 3
        %213 = vperm.xlu0 %212, %v183
        %v214 = vpop.permute.xlu0 %213
        %v216 = vlaneseq
        %v217 = vshrl.u32 %v216, 7
        %v218 = vsub.s32 3, %v217
        %v219 = vrot.slane %v182, %v218
        %v220 = vmul.f32 %v214, %v219
        %v221 = vadd.f32 %v193, %v202
        %v222 = vadd.f32 %v221, %v211
        %v223 = vadd.f32 %v222, %v220
        %224 = vadd.xlane.f32.xlu0 %v223
        %v225 = vpop.xlane.xlu0 %224
        %v226 = vmul.f32 %v223, %v223
        %227 = vadd.xlane.f32.xlu0 %v226
        %v228 = vpop.xlane.xlu0 %227
        %v229 = vld [vmem:[%s174] sm:$0xff]
        %vm230 = vcmask 7168
        %v231 = vsel %vm230, %v225, %v228
        %v232 = vadd.f32 %v229, %v231
        %vm233 = vcmask 15360
        %234 = vst.msk [vmem:[%s174] sm:$0xff] %vm233, %v232
        %p235 = scmp.lt.s32.totalorder %s20, 1
        %s236 = scalar_select %p235, %s20, 1
        %s237 = smul.addr %s236, 8
        %s238 = scalar_lea.vmem %s2, %s237
        // Predicated region
        $region37: #{tpu_custom_call.1} parent=27 // pred_check
          %p239 = pneg %p95
        $region38: #{tpu_custom_call.1} parent=27 // pred_check_branch
          %241 = sbr.rel (%p239) target = $region40
        $region39: #{tpu_custom_call.1} parent=27 // pred_region
          _
        $region40: #{tpu_custom_call.1} parent=27 // pred_fallthru
          _
      $region28: #{tpu_custom_call.1} parent=5 // pred_fallthru
        _
      %p242 = scmp.le.s32.totalorder 2, %s11
      // Predicated region
      $region41: #{tpu_custom_call.1} parent=5 // pred_check
        %p243 = pneg %p242
      $region42: #{tpu_custom_call.1} parent=5 // pred_check_branch
        %245 = sbr.rel (%p243) target = $region44
      $region43: #{tpu_custom_call.1} parent=5 // pred_region
        %s246 = ssub.s32 %s11, 2
        // Predicated region
        $region45: #{tpu_custom_call.1} parent=43 // pred_check
          %p247 = pneg %p101
        $region46: #{tpu_custom_call.1} parent=43 // pred_check_branch
          %249 = sbr.rel (%p247) target = $region48
        $region47: #{tpu_custom_call.1} parent=43 // pred_region
          %p250 = scmp.lt.s32.totalorder %s22, 1
          %s251 = scalar_select %p250, %s22, 1
          %s252 = smul.addr %s251, 8
          %s253 = scalar_lea.vmem %s2, %s252
        $region48: #{tpu_custom_call.1} parent=43 // pred_fallthru
          _
      $region44: #{tpu_custom_call.1} parent=5 // pred_fallthru
        _
    $region6: #{tpu_custom_call.1} parent=1 // loop_footer
      %s15 = sadd.s32 1, %s11
    $region7: #{tpu_custom_call.1} parent=1 // loop_footer_branch
      %10 = sbr.rel target = $region3
    $region8: #{tpu_custom_call.1} parent=1 // loop_exit
      _
    %254 = vsyncpa [#allocation3], 1
    %s255 = scalar_lea.sflag [#allocation3], 1
    %256 = vsyncpa %s255, 1

</llo_original>
